<compile_context>
chip_gen: v7x
topology: tpu7x:2x2x1
jax: 0.10.0
libtpu: 0.0.40
codegen_flags: <defaults>
</compile_context>

<pallas_src>
import functools

import jax
import jax.numpy as jnp
from jax import lax
from jax.experimental import pallas as pl
from jax.experimental.pallas import tpu as pltpu

_EPS = 1e-12  # torch.nn.functional.normalize default eps


# ---------------------------------------------------------------------------
# Tile / VMEM budgeting helpers
# ---------------------------------------------------------------------------
def _detect_vmem_bytes():
    """Per-core physical VMEM (v5e/v6e 128 MiB, v7x 64 MiB); conservative default."""
    try:
        v = int(pltpu.get_tpu_info().vmem_capacity_bytes)
        return min(max(v, 16 << 20), 128 << 20)
    except Exception:
        return 64 << 20  # v7x-safe default


def _pick_row_tile(n, target, align):
    """Largest divisor of n <= target, preferring MXU-row multiples (256, 128) and
    then `align` (16 for bf16 sublane packing, 8 otherwise). Always returns a
    divisor of n, so an awkward n can never produce an over-budget monolithic tile."""
    target = max(1, min(int(target), n))
    for pref in (256, 128, align, 1):
        for t in range(target, pref - 1, -1):
            if n % t == 0 and t % pref == 0:
                return t
    return 1


def _row_tile_cap(n, d, in_bytes, mxu_bytes, mask_bytes, budget):
    """Max row-tile size whose working set fits the VMEM budget."""
    resident = n * d * mxu_bytes                      # cached keys, single buffer
    per_row = 2 * d * in_bytes                        # query tile, double-buffered
    per_row += 6 * n * 4                              # (tq, N) f32 temporaries
    per_row += (2 * n * mask_bytes) if mask_bytes else 0
    per_row += 8                                      # output row, double-buffered
    left = budget - resident - (2 << 20)
    if left <= per_row * 8:
        return 8
    return int(left // per_row)


def _vmem_limit_bytes(n, d, tq, in_bytes, mxu_bytes, mask_bytes, phys):
    """Scoped-VMEM limit for the main kernel (defaults are only 16/32 MiB, far below
    physical, so moderate N would otherwise force tiny tiles or fail)."""
    need = n * d * mxu_bytes                          # resident keys (single buffer)
    need += 2 * tq * d * in_bytes                     # query double buffer
    need += 6 * tq * n * 4                            # (tq, N) f32 temporaries
    need += 2 * tq * 4                                # output double buffer
    need += (2 * tq * n * mask_bytes) if mask_bytes else 0
    need = int(need * 1.25) + (2 << 20)
    return int(min(int(phys * 0.9), max(32 << 20, need)))


def _resident_key_spec(shape):
    """Resident (constant index_map) normalized-key block. Buffered(1): the second
    pipeline buffer is never used because the block index never changes."""
    index_map = lambda i: (0, 0)
    try:
        return pl.BlockSpec(shape, index_map, pipeline_mode=pl.Buffered(1))
    except Exception:  # pragma: no cover - fall back to default double buffering
        return pl.BlockSpec(shape, index_map)


# ---------------------------------------------------------------------------
# Kernels
# ---------------------------------------------------------------------------
def _normalize_rows_kernel(x_ref, o_ref):
    """Row-wise L2 normalization (eps=1e-12), cast to the output (MXU) dtype."""
    x = x_ref[...].astype(jnp.float32)
    eps2 = jnp.float32(_EPS * _EPS)
    scale = lax.rsqrt(jnp.maximum(jnp.sum(x * x, axis=1, keepdims=True), eps2))
    o_ref[...] = (x * scale).astype(o_ref.dtype)


def _normalize_keys(x_k, out_dtype):
    """One-time key normalization + MXU-dtype cast; consumed read-only afterwards."""
    n, d = x_k.shape
    tr = _pick_row_tile(n, 1024, 8)
    return pl.pallas_call(
        _normalize_rows_kernel,
        out_shape=jax.ShapeDtypeStruct((n, d), out_dtype),
        grid_spec=pltpu.PrefetchScalarGridSpec(
            num_scalar_prefetch=0, grid=(n // tr,),
            in_specs=[pl.BlockSpec((tr, d), lambda i: (i, 0))],
            out_specs=pl.BlockSpec((tr, d), lambda i: (i, 0))),
        compiler_params=pltpu.CompilerParams(dimension_semantics=("parallel",)),
    )(x_k)


def _query_logits(xq_ref, xkn_ref, inv_temp):
    """Normalize the query tile (f32 math, rsqrt on the EUP), fold 1/T into it
    (N*D mul, not N*N), and matmul against the cached pre-normalized keys."""
    eps2 = jnp.float32(_EPS * _EPS)
    xq = xq_ref[...].astype(jnp.float32)
    q_scale = lax.rsqrt(jnp.maximum(jnp.sum(xq * xq, axis=1, keepdims=True), eps2))
    xq_n = xq * (q_scale * jnp.float32(inv_temp))
    sim = lax.dot_general(
        xq_n.astype(xkn_ref.dtype), xkn_ref[...],
        dimension_numbers=(((1,), (1,)), ((), ())),
        preferred_element_type=jnp.float32)
    return xq_n, sim                                  # sim: (tq, N), already / T


def _row_lse(sim):
    m = jnp.max(sim, axis=1, keepdims=True)
    return m + jnp.log(jnp.sum(jnp.exp(sim - m), axis=1, keepdims=True))


def _contrastive_rows_eye_kernel(xq_ref, xkn_ref, out_ref, *, inv_temp):
    """Default mask_pos == eye(N): no O(N^2) mask DMA; loss_i = lse_i - sim_ii.
    Diagonal read directly from the operands (one (tq, D) pass) instead of
    full-width iota / compare / where / reduce passes."""
    tq = xq_ref.shape[0]
    xq_n, sim = _query_logits(xq_ref, xkn_ref, inv_temp)
    lse = _row_lse(sim)
    row0 = pl.multiple_of(pl.program_id(0) * tq, tq)
    xk_win = xkn_ref[pl.ds(row0, tq), :].astype(jnp.float32)       # (tq, D)
    diag_sim = jnp.sum(xq_n * xk_win, axis=1, keepdims=True)       # (tq, 1)
    out_ref[...] = jnp.transpose(lse - diag_sim)                   # (1, tq) lane-dense


def _contrastive_rows_mask_kernel(xq_ref, xkn_ref, mask_ref, out_ref, *, inv_temp):
    """General mask_pos path; mask folded into one multiply + row reduction:
    loss_i = lse_i - (sum_j mask_ij * sim_ij) / (sum_j mask_ij).
    (msum == 0 yields NaN, matching the PyTorch 0/0 behavior.)"""
    _, sim = _query_logits(xq_ref, xkn_ref, inv_temp)
    lse = _row_lse(sim)
    mask = mask_ref[...].astype(jnp.float32)
    msum = jnp.sum(mask, axis=1, keepdims=True)
    msim = jnp.sum(mask * sim, axis=1, keepdims=True)
    out_ref[...] = jnp.transpose(lse - msim / msum)                # (1, tq) lane-dense


# ---------------------------------------------------------------------------
# Wrapper
# ---------------------------------------------------------------------------
def contrastive_loss(x_q, x_k, mask_pos=None, temperature=1.0, block_q=512,
                     mask_dma_dtype=None):
    """Pallas TPU implementation of ContrastiveLoss.forward.

    mask_dma_dtype: optionally narrow the (N, N) mask for DMA (e.g. jnp.bfloat16,
    exact for 0/1 masks). It is the only O(N^2) HBM input, so this is a direct
    mem-bound win (largest on v5e). Default None keeps the caller's dtype exact.
    """
    N, D = x_q.shape
    assert x_k.shape == (N, D)
    inv_temp = 1.0 / float(temperature)

    # bf16 inputs keep bf16 MXU operands (full-rate MXU); everything else runs f32.
    mxu_dtype = jnp.bfloat16 if x_q.dtype == jnp.bfloat16 else jnp.float32
    in_bytes = jnp.dtype(x_q.dtype).itemsize
    mxu_bytes = jnp.dtype(mxu_dtype).itemsize
    align = 16 if mxu_dtype == jnp.bfloat16 else 8    # sublane packing for bf16

    if mask_pos is not None and mask_dma_dtype is not None:
        mask_pos = mask_pos.astype(mask_dma_dtype)
    mask_bytes = jnp.dtype(mask_pos.dtype).itemsize if mask_pos is not None else 0

    phys_vmem = _detect_vmem_bytes()
    cap = _row_tile_cap(N, D, in_bytes, mxu_bytes, mask_bytes, int(phys_vmem * 0.7))
    tq = _pick_row_tile(N, min(block_q, cap), align)
    grid = (N // tq,)

    # One-time key normalization + cast (the main kernel never re-normalizes keys).
    xk_n = _normalize_keys(x_k, mxu_dtype)

    cparams = pltpu.CompilerParams(
        dimension_semantics=("parallel",),
        vmem_limit_bytes=_vmem_limit_bytes(N, D, tq, in_bytes, mxu_bytes, mask_bytes,
                                           phys_vmem))

    # Lane-dense per-row losses: (N/tq, tq) output, block (1, tq) -> unmasked stores.
    out_shape = jax.ShapeDtypeStruct((N // tq, tq), jnp.float32)
    xq_spec = pl.BlockSpec((tq, D), lambda i: (i, 0))    # pipelined per row tile
    xkn_spec = _resident_key_spec((N, D))                # resident, single buffer
    out_spec = pl.BlockSpec((1, tq), lambda i: (i, 0))

    if mask_pos is None:
        kernel = functools.partial(_contrastive_rows_eye_kernel, inv_temp=inv_temp)
        in_specs, args = [xq_spec, xkn_spec], (x_q, xk_n)
    else:
        kernel = functools.partial(_contrastive_rows_mask_kernel, inv_temp=inv_temp)
        mask_spec = pl.BlockSpec((tq, N), lambda i: (i, 0))
        in_specs, args = [xq_spec, xkn_spec, mask_spec], (x_q, xk_n, mask_pos)

    row_losses = pl.pallas_call(
        kernel,
        out_shape=out_shape,
        grid_spec=pltpu.PrefetchScalarGridSpec(
            num_scalar_prefetch=0, grid=grid,
            in_specs=in_specs, out_specs=out_spec),
        compiler_params=cparams,
    )(*args)

    # Final scalar reduction outside the kernel (keeps the row axis "parallel" /
    # megacore-shardable instead of a serialized in-kernel accumulator).
    return jnp.sum(row_losses) / jnp.float32(N * N)


def _reference_loss(x_q, x_k, mask_pos=None, temperature=1.0):
    """Pure-JAX reference mirroring the PyTorch module."""
    eps = 1e-12
    xq = x_q / jnp.maximum(jnp.linalg.norm(x_q, axis=1, keepdims=True), eps)
    xk = x_k / jnp.maximum(jnp.linalg.norm(x_k, axis=1, keepdims=True), eps)
    N = x_q.shape[0]
    if mask_pos is None:
        mask_pos = jnp.eye(N, dtype=jnp.float32)
    sim = (xq @ xk.T) / temperature
    sim = -jax.nn.log_softmax(sim, axis=1)
    nll = sim * mask_pos / jnp.sum(mask_pos, axis=1, keepdims=True)
    return jnp.mean(nll)


if __name__ == "__main__":
    key = jax.random.PRNGKey(0)
    kq, kk, km = jax.random.split(key, 3)

    # Small shapes consistent with the module: batch of embeddings, hidden dim.
    N, D = 8, 32
    x_q = jax.random.normal(kq, (N, D), dtype=jnp.float32)
    x_k = jax.random.normal(kk, (N, D), dtype=jnp.float32)

    # 1) default (identity-mask) path — no mask DMA, single row tile.
    loss = jax.block_until_ready(contrastive_loss(x_q, x_k, temperature=0.5))
    ref = jax.block_until_ready(_reference_loss(x_q, x_k, temperature=0.5))
    assert jnp.allclose(loss, ref, atol=1e-5, rtol=1e-4), (loss, ref)

    # 2) explicit-mask path with a multi-tile grid (N=16, tq=8 -> 2 grid steps).
    N2, D2 = 16, 32
    xq2 = jax.random.normal(kq, (N2, D2), dtype=jnp.float32)
    xk2 = jax.random.normal(kk, (N2, D2), dtype=jnp.float32)
    mask = (jax.random.uniform(km, (N2, N2)) > 0.5).astype(jnp.float32)
    mask = jnp.minimum(mask + jnp.eye(N2, dtype=jnp.float32), 1.0)  # no all-zero rows
    loss2 = jax.block_until_ready(
        contrastive_loss(xq2, xk2, mask_pos=mask, temperature=1.0, block_q=8))
    ref2 = jax.block_until_ready(_reference_loss(xq2, xk2, mask_pos=mask))
    assert jnp.allclose(loss2, ref2, atol=1e-5, rtol=1e-4), (loss2, ref2)

    # 3) identity-mask path, multi-tile grid (exercises the dynamic diagonal slice).
    loss3 = jax.block_until_ready(contrastive_loss(xq2, xk2, block_q=8))
    ref3 = jax.block_until_ready(_reference_loss(xq2, xk2))
    assert jnp.allclose(loss3, ref3, atol=1e-5, rtol=1e-4), (loss3, ref3)

    # 4) masked path shipping the mask as bf16 over HBM (exact for 0/1 masks).
    loss4 = jax.block_until_ready(
        contrastive_loss(xq2, xk2, mask_pos=mask, temperature=1.0, block_q=16,
                         mask_dma_dtype=jnp.bfloat16))
    assert jnp.allclose(loss4, ref2, atol=1e-5, rtol=1e-4), (loss4, ref2)

    print("KERNEL_OK")
</pallas_src>

<mosaic_0001>
module attributes {stable_mosaic.version = 11 : i64} {
  func.func @_normalize_rows_kernel(%arg0: i32, %arg1: memref<8x32xf32, #tpu.memory_space<vmem>>, %arg2: memref<8x32xf32, #tpu.memory_space<vmem>>) attributes {dimension_semantics = [#tpu.dimension_semantics<parallel>], iteration_bounds = array<i64: 1>, scalar_prefetch = 0 : i64, scratch_operands = 0 : i64, tpu.core_type = #tpu.core_type<tc>, window_params = [{transform_indices = @transform_0, window_bounds = array<i64: 8, 32>}, {transform_indices = @transform_1, window_bounds = array<i64: 8, 32>}]} {
    %c0 = arith.constant 0 : index
    %c0_0 = arith.constant 0 : index
    %0 = vector.load %arg1[%c0, %c0_0] : memref<8x32xf32, #tpu.memory_space<vmem>>, vector<8x32xf32>
    %1 = arith.mulf %0, %0 : vector<8x32xf32>
    %cst = arith.constant dense<0.000000e+00> : vector<8xf32>
    %2 = vector.multi_reduction <add>, %1, %cst [1] : vector<8x32xf32> to vector<8xf32>
    %3 = vector.shape_cast %2 : vector<8xf32> to vector<8x1xf32>
    %cst_1 = arith.constant 1.000000e-24 : f32
    %4 = vector.broadcast %cst_1 : f32 to vector<8x1xf32>
    %5 = arith.maximumf %3, %4 : vector<8x1xf32>
    %6 = math.rsqrt %5 : vector<8x1xf32>
    %7 = vector.broadcast %6 : vector<8x1xf32> to vector<8x32xf32>
    %8 = arith.mulf %0, %7 : vector<8x32xf32>
    %c0_2 = arith.constant 0 : index
    %c0_3 = arith.constant 0 : index
    %9 = vector.load %arg2[%c0_2, %c0_3] : memref<8x32xf32, #tpu.memory_space<vmem>>, vector<8x32xf32>
    tpu.vector_store %arg2[%c0_2, %c0_3], %8 {strides = array<i32>} : memref<8x32xf32, #tpu.memory_space<vmem>>, vector<8x32xf32>,
    return
  }
  func.func @transform_0(%arg0: i32) -> (i32, i32) {
    %c0_i32 = arith.constant 0 : i32
    %c0_i32_0 = arith.constant 0 : i32
    return %arg0, %c0_i32 : i32, i32
  }
  func.func @transform_1(%arg0: i32) -> (i32, i32) {
    %c0_i32 = arith.constant 0 : i32
    %c0_i32_0 = arith.constant 0 : i32
    return %arg0, %c0_i32 : i32, i32
  }
}

</mosaic_0001>

<llo_original>
// kernel: tpu_custom_call.1
$region0: #{tpu_custom_call.1}
  #allocation0 [shape = 'u32[]', space=smem, size = 0x4, offset = 0x4, fixed_abs, tag = 'smem constant byte address 0x4 - core index']
  #allocation1 [shape = 'u32[144,128]{1,0:T(1,128)}', space=vmem, size = 0x12000, scoped, tag = 'internal scratch']
  %s0 = inlined_call_operand.hbm [shape: f32[8,32], index: 0, kind: input, shape index: {}]
  %s1 = inlined_call_operand.hbm [shape: f32[8,32], index: 1, kind: output, shape index: {}]
  %s2 = sld [smem:[#allocation0]]
  $region18: #{tpu_custom_call.1} parent=0
    _
  %s4 = ssub.s32 1, %s2
  %s5 = scalar_select 0, %s4, %s2
  $region1: #{tpu_custom_call.1} parent=0
    #allocation2 [shape = 'u8[4096]{0}', space=vmem, size = 0x1000, scoped, tag = 'input window, operand 0, single buffered']
    #allocation3 [shape = 's32[1]{0}', space=sflag, size = 0x4, scoped, tag = 'scoped memory for tpu_custom_call.1']
    #allocation4 [shape = 's32[1]{0}', space=sflag, size = 0x4, scoped, tag = 'scoped memory for tpu_custom_call.1']
    #allocation5 [shape = 'u8[4096]{0}', space=vmem, size = 0x1000, scoped, tag = 'output window, operand 0, single buffered']
    %6 = vsyncpa [#allocation3], 0
    %7 = vsyncpa [#allocation4], 0
    // Predicated region
    $region2: #{tpu_custom_call.1} parent=1 // pred_check
      _
    $region3: #{tpu_custom_call.1} parent=1 // pred_check_branch
      %9 = sbr.rel (0) target = $region5
    $region4: #{tpu_custom_call.1} parent=1 // pred_region
      %s11 = ssub.s32 128, 128
      %12 = vsyncadd [#allocation3], %s11
      %s14 = sshll.u32 [#allocation2], 4
      %s15 = int_to_ptr.vmem [resolvable:$true] %s14
      %17 = dma.hbm_to_vmem [thread:$0]  %s0, 128, %s15, [#allocation3]
    $region5: #{tpu_custom_call.1} parent=1 // pred_fallthru
      _
    // Predicated region
    $region6: #{tpu_custom_call.1} parent=1 // pred_check
      _
    $region7: #{tpu_custom_call.1} parent=1 // pred_check_branch
      %19 = sbr.rel (0) target = $region9
    $region8: #{tpu_custom_call.1} parent=1 // pred_region
      %20 = dma.done [#allocation3], 128
    $region9: #{tpu_custom_call.1} parent=1 // pred_fallthru
      _
    %v21 = vld [vmem:[#allocation2] sm:$0xff]
    %v22 = vmul.f32 %v21, %v21
    %vm23 = vcmask 261120
    %v24 = vsel %vm23, %v22, 0.0
    %25 = vadd.xlane.f32.xlu0 %v24
    %v26 = vpop.xlane.xlu0 %25
    %v27 = vmax.f32 %v26, 1e-24
    %v28 = vrsqrt.pop %v27
    %v29 = vmul.f32 %v21, %v28
    %30 = vst.msk [vmem:[#allocation5] sm:$0xff] %vm23, %v29
    // Predicated region
    $region10: #{tpu_custom_call.1} parent=1 // pred_check
      _
    $region11: #{tpu_custom_call.1} parent=1 // pred_check_branch
      %32 = sbr.rel (0) target = $region13
    $region12: #{tpu_custom_call.1} parent=1 // pred_region
      %s34 = ssub.s32 128, 128
      %35 = vsyncadd [#allocation4], %s34
      %s37 = sshll.u32 [#allocation5], 4
      %s38 = int_to_ptr.vmem [resolvable:$true] %s37
      %40 = dma.vmem_to_hbm [thread:$0]  %s38, 128, %s1, [#allocation4]
    $region13: #{tpu_custom_call.1} parent=1 // pred_fallthru
      _
    // Predicated region
    $region14: #{tpu_custom_call.1} parent=1 // pred_check
      _
    $region15: #{tpu_custom_call.1} parent=1 // pred_check_branch
      %42 = sbr.rel (0) target = $region17
    $region16: #{tpu_custom_call.1} parent=1 // pred_region
      %43 = dma.done [#allocation4], 128
    $region17: #{tpu_custom_call.1} parent=1 // pred_fallthru
      _
    %44 = vsyncpa [#allocation3], 1
    %45 = vsyncpa [#allocation4], 1

</llo_original>
